<compile_context>
chip_gen: v7x
topology: tpu7x:2x2x1
jax: 0.10.0
libtpu: 0.0.40
codegen_flags: <defaults>
</compile_context>

<pallas_src>
import jax
import jax.numpy as jnp
from jax.experimental import pallas as pl
from jax.experimental.pallas import tpu as pltpu


def _mha_encoder_kernel(x_ref, mrow_ref, mcol_ref,
                        wq_ref, wk_ref, wv_ref,
                        bq_ref, bk_ref, bv_ref,
                        wo_ref, bo_ref, out_ref):
    # x_ref   : (BB*T, D) bf16  -- BB sequences flattened for dense MXU matmuls
    # mrow_ref: (BB, 1, T) f32  -- mask as a row (key masking, inner softmax)
    # mcol_ref: (BB, T, 1) f32  -- mask as a column (outer softmax over T)
    # wq/wk/wv: (D, D)   bf16   -- already transposed; 1/sqrt(D) folded into wq
    # bq/bk/bv: (1, D)   f32    -- 1/sqrt(D) folded into bq
    # wo_ref  : (1, D)   f32 ;  bo_ref: (1, 1) f32
    # out_ref : (BB, D)  f32    -- lane-dense 2-D output slab
    BB, T, _ = mcol_ref.shape
    D = x_ref.shape[-1]

    xf = x_ref[...]                                  # (BB*T, D) bf16
    m_row = mrow_ref[...]                            # (BB, 1, T)
    m_col = mcol_ref[...]                            # (BB, T, 1)

    # --- Q/K/V projections: one bf16 MXU matmul each over all BB*T rows -------
    q = (jnp.dot(xf, wq_ref[...], preferred_element_type=jnp.float32)
         + bq_ref[...]).reshape(BB, T, D)
    k = (jnp.dot(xf, wk_ref[...], preferred_element_type=jnp.float32)
         + bk_ref[...]).reshape(BB, T, D)
    v = (jnp.dot(xf, wv_ref[...], preferred_element_type=jnp.float32)
         + bv_ref[...]).reshape(BB, T, D)

    # --- scaled similarities (scale already folded into wq/bq) ----------------
    sim = jnp.einsum('btd,bsd->bts', q, k,
                     preferred_element_type=jnp.float32)          # (BB, T, T)

    # --- inner masked softmax over keys (memory_efficient style fill) ---------
    neg = jnp.finfo(jnp.float32).min
    sim = jnp.where(m_row > 0, sim, neg)
    sim = sim - jnp.max(sim, axis=-1, keepdims=True)
    e = jnp.exp(sim)
    attn = e * pl.reciprocal(jnp.sum(e, axis=-1, keepdims=True), approx=True)

    # --- context, then scalar logit per timestep (VPU mul + lane reduce) ------
    ctx = jnp.einsum('bts,bsd->btd', attn, v,
                     preferred_element_type=jnp.float32)          # (BB, T, D)
    logits = jnp.sum(ctx * wo_ref[...], axis=-1, keepdims=True) + bo_ref[...]
    # logits: (BB, T, 1)

    # --- outer masked_softmax over T (AllenNLP non-memory-efficient form) -----
    z = logits * m_col
    z = z - jnp.max(z, axis=1, keepdims=True)
    ez = jnp.exp(z)
    sm = ez * pl.reciprocal(jnp.sum(ez, axis=1, keepdims=True), approx=True)
    sm = sm * m_col
    w = sm * pl.reciprocal(jnp.sum(sm, axis=1, keepdims=True) + 1e-13,
                           approx=True)                           # (BB, T, 1)

    # --- weighted sum of the ORIGINAL inputs -----------------------------------
    x3 = xf.astype(jnp.float32).reshape(BB, T, D)
    out_ref[...] = jnp.sum(w * x3, axis=1).astype(out_ref.dtype)  # (BB, D)


def _prepare_params(wc, bc, wo, bo):
    """One-time weight transform: split combined QKV weights, transpose,
    fold 1/sqrt(D) into the Q projection, cast MXU operands to bf16."""
    D = wc.shape[1]
    scale = float(D) ** 0.5
    wq = (wc[:D, :].T / scale).astype(jnp.bfloat16)        # (D, D)
    wk = wc[D:2 * D, :].T.astype(jnp.bfloat16)             # (D, D)
    wv = wc[2 * D:, :].T.astype(jnp.bfloat16)              # (D, D)
    bq = (bc[:D] / scale).reshape(1, D).astype(jnp.float32)
    bk = bc[D:2 * D].reshape(1, D).astype(jnp.float32)
    bv = bc[2 * D:].reshape(1, D).astype(jnp.float32)
    wo_row = wo.reshape(1, D).astype(jnp.float32)
    bo2 = bo.reshape(1, 1).astype(jnp.float32)
    return wq, wk, wv, bq, bk, bv, wo_row, bo2


def _choose_block_b(B, T, block_b):
    if block_b is None:
        # ~256 flattened rows per grid step keeps the MXU M-dim full on v6e/v7x
        # (>=128 on v5e) while staying far below the 32 MiB scoped VMEM budget.
        block_b = max(1, 256 // max(T, 1))
    block_b = max(1, min(block_b, B))
    if block_b < B:
        # Multi-step grid: keep second-minor block dims 8-aligned (8,128 rule).
        block_b = max(8, (block_b // 8) * 8)
        if block_b >= B:
            block_b = B
    return block_b


def multi_head_attention_encoder(inputs, inputs_mask, wc, bc, wo, bo, *,
                                 block_b=None):
    """inputs: (B, T, D), inputs_mask: (B, T) {0,1}.
    wc: (3D, D), bc: (3D,)  -- combined projection (PyTorch Linear layout)
    wo: (1, D),  bo: (1,)   -- output projection
    returns: (B, D) f32."""
    B, T, D = inputs.shape
    block_b = _choose_block_b(B, T, block_b)
    grid_b = -(-B // block_b)                   # cdiv
    Bp = grid_b * block_b
    pad = Bp - B

    x = inputs.astype(jnp.bfloat16)
    m = inputs_mask.astype(jnp.float32)
    if pad:
        # Padded rows are fully masked -> outer softmax weights are exactly 0,
        # results are sliced off below. No NaNs (inner softmax degrades to uniform).
        x = jnp.concatenate([x, jnp.zeros((pad, T, D), x.dtype)], axis=0)
        m = jnp.concatenate([m, jnp.zeros((pad, T), m.dtype)], axis=0)
    x2 = x.reshape(Bp * T, D)                   # flattened for dense matmuls
    mask_row = m.reshape(Bp, 1, T)
    mask_col = m.reshape(Bp, T, 1)

    # TODO(synk): hoist _prepare_params (and the bf16 casts) out of the hot path
    # when this wrapper is invoked repeatedly with the same weights.
    wq, wk, wv, bq, bk, bv, wo_row, bo2 = _prepare_params(wc, bc, wo, bo)

    out = pl.pallas_call(
        _mha_encoder_kernel,
        out_shape=jax.ShapeDtypeStruct((Bp, D), jnp.float32),
        grid_spec=pltpu.PrefetchScalarGridSpec(
            num_scalar_prefetch=0,
            grid=(grid_b,),
            in_specs=[
                pl.BlockSpec((block_b * T, D), lambda b: (b, 0)),      # x (flat)
                pl.BlockSpec((block_b, 1, T), lambda b: (b, 0, 0)),    # mask row
                pl.BlockSpec((block_b, T, 1), lambda b: (b, 0, 0)),    # mask col
                pl.BlockSpec((D, D), lambda b: (0, 0)),                # wq
                pl.BlockSpec((D, D), lambda b: (0, 0)),                # wk
                pl.BlockSpec((D, D), lambda b: (0, 0)),                # wv
                pl.BlockSpec((1, D), lambda b: (0, 0)),                # bq
                pl.BlockSpec((1, D), lambda b: (0, 0)),                # bk
                pl.BlockSpec((1, D), lambda b: (0, 0)),                # bv
                pl.BlockSpec((1, D), lambda b: (0, 0)),                # wo
                pl.BlockSpec((1, 1), lambda b: (0, 0)),                # bo
            ],
            out_specs=pl.BlockSpec((block_b, D), lambda b: (b, 0)),
        ),
        compiler_params=pltpu.CompilerParams(
            dimension_semantics=("parallel",),
            vmem_limit_bytes=32 * 1024 * 1024,   # explicit; safe on v5e/v6e/v7x
        ),
    )(x2, mask_row, mask_col, wq, wk, wv, bq, bk, bv, wo_row, bo2)
    return out[:B]


def _reference(inputs, mask, wc, bc, wo, bo):
    """Pure-JAX f32 reference of the PyTorch forward (eval mode)."""
    B, T, D = inputs.shape
    m = mask.astype(jnp.float32)
    proj = inputs @ wc.T + bc
    q, k, v = proj[..., :D], proj[..., D:2 * D], proj[..., 2 * D:]
    sim = jnp.einsum('btd,bsd->bts', q / jnp.sqrt(jnp.float32(D)), k)
    sim = jnp.where(m[:, None, :] > 0, sim, jnp.finfo(jnp.float32).min)
    attn = jax.nn.softmax(sim, axis=-1)
    ctx = jnp.einsum('bts,bsd->btd', attn, v)
    logits = ctx @ wo.T + bo                         # (B, T, 1)
    vec = jnp.swapaxes(logits, 1, 2)                 # (B, 1, T)
    mm = m[:, None, :]
    r = jax.nn.softmax(vec * mm, axis=-1) * mm
    r = r / (r.sum(axis=-1, keepdims=True) + 1e-13)
    return jnp.einsum('bqt,btd->bqd', r, inputs)[:, 0, :]


if __name__ == "__main__":
    B, T, D = 2, 8, 32
    key = jax.random.PRNGKey(0)
    k_x, k_wc, k_bc, k_wo, k_bo = jax.random.split(key, 5)

    inputs = jax.random.normal(k_x, (B, T, D), dtype=jnp.float32)
    # mask: first sequence full, second sequence has 3 padded (masked) steps
    inputs_mask = jnp.array(
        [[1] * T, [1] * (T - 3) + [0] * 3], dtype=jnp.float32)

    # Deterministic PyTorch-Linear-style init: U(-1/sqrt(fan_in), 1/sqrt(fan_in))
    lim = 1.0 / jnp.sqrt(jnp.float32(D))
    wc = jax.random.uniform(k_wc, (3 * D, D), jnp.float32, -lim, lim)
    bc = jax.random.uniform(k_bc, (3 * D,), jnp.float32, -lim, lim)
    wo = jax.random.uniform(k_wo, (1, D), jnp.float32, -lim, lim)
    bo = jax.random.uniform(k_bo, (1,), jnp.float32, -lim, lim)

    out = multi_head_attention_encoder(inputs, inputs_mask, wc, bc, wo, bo)
    out = jax.block_until_ready(out)
    ref = _reference(inputs, inputs_mask, wc, bc, wo, bo)
    assert out.shape == (B, D), out.shape
    # bf16 MXU operands + approx-reciprocal softmax => relaxed tolerance vs f32 ref.
    assert jnp.allclose(out, ref, rtol=3e-2, atol=3e-2), (out, ref)

    # Second config: multi-step grid + batch padding (B=20, block_b=8 -> Bp=24).
    B2 = 20
    k_x2, k_m2 = jax.random.split(jax.random.PRNGKey(1), 2)
    inputs2 = jax.random.normal(k_x2, (B2, T, D), dtype=jnp.float32)
    mask2 = (jax.random.uniform(k_m2, (B2, T)) > 0.3).astype(jnp.float32)
    mask2 = mask2.at[:, 0].set(1.0)   # at least one valid timestep per sequence
    out2 = multi_head_attention_encoder(inputs2, mask2, wc, bc, wo, bo, block_b=8)
    out2 = jax.block_until_ready(out2)
    ref2 = _reference(inputs2, mask2, wc, bc, wo, bo)
    assert out2.shape == (B2, D), out2.shape
    assert jnp.allclose(out2, ref2, rtol=3e-2, atol=3e-2), (out2, ref2)

    print("KERNEL_OK")
</pallas_src>

<mosaic_0001>
module attributes {stable_mosaic.version = 11 : i64} {
  func.func @_mha_encoder_kernel(%arg0: i32, %arg1: memref<16x32xbf16, #tpu.memory_space<vmem>>, %arg2: memref<2x1x8xf32, #tpu.memory_space<vmem>>, %arg3: memref<2x8x1xf32, #tpu.memory_space<vmem>>, %arg4: memref<32x32xbf16, #tpu.memory_space<vmem>>, %arg5: memref<32x32xbf16, #tpu.memory_space<vmem>>, %arg6: memref<32x32xbf16, #tpu.memory_space<vmem>>, %arg7: memref<1x32xf32, #tpu.memory_space<vmem>>, %arg8: memref<1x32xf32, #tpu.memory_space<vmem>>, %arg9: memref<1x32xf32, #tpu.memory_space<vmem>>, %arg10: memref<1x32xf32, #tpu.memory_space<vmem>>, %arg11: memref<1x1xf32, #tpu.memory_space<vmem>>, %arg12: memref<2x32xf32, #tpu.memory_space<vmem>>) attributes {dimension_semantics = [#tpu.dimension_semantics<parallel>], iteration_bounds = array<i64: 1>, scalar_prefetch = 0 : i64, scratch_operands = 0 : i64, tpu.core_type = #tpu.core_type<tc>, window_params = [{transform_indices = @transform_0, window_bounds = array<i64: 16, 32>}, {transform_indices = @transform_1, window_bounds = array<i64: 2, 1, 8>}, {transform_indices = @transform_2, window_bounds = array<i64: 2, 8, 1>}, {pipeline_mode = #tpu.pipeline_mode<synchronous>, transform_indices = @transform_3, window_bounds = array<i64: 32, 32>}, {pipeline_mode = #tpu.pipeline_mode<synchronous>, transform_indices = @transform_4, window_bounds = array<i64: 32, 32>}, {pipeline_mode = #tpu.pipeline_mode<synchronous>, transform_indices = @transform_5, window_bounds = array<i64: 32, 32>}, {pipeline_mode = #tpu.pipeline_mode<synchronous>, transform_indices = @transform_6, window_bounds = array<i64: 1, 32>}, {pipeline_mode = #tpu.pipeline_mode<synchronous>, transform_indices = @transform_7, window_bounds = array<i64: 1, 32>}, {pipeline_mode = #tpu.pipeline_mode<synchronous>, transform_indices = @transform_8, window_bounds = array<i64: 1, 32>}, {pipeline_mode = #tpu.pipeline_mode<synchronous>, transform_indices = @transform_9, window_bounds = array<i64: 1, 32>}, {pipeline_mode = #tpu.pipeline_mode<synchronous>, transform_indices = @transform_10, window_bounds = array<i64: 1, 1>}, {transform_indices = @transform_11, window_bounds = array<i64: 2, 32>}]} {
    %c0 = arith.constant 0 : index
    %c0_0 = arith.constant 0 : index
    %0 = vector.load %arg1[%c0, %c0_0] : memref<16x32xbf16, #tpu.memory_space<vmem>>, vector<16x32xbf16>
    %c0_1 = arith.constant 0 : index
    %c0_2 = arith.constant 0 : index
    %c0_3 = arith.constant 0 : index
    %1 = vector.load %arg2[%c0_1, %c0_2, %c0_3] : memref<2x1x8xf32, #tpu.memory_space<vmem>>, vector<2x1x8xf32>
    %c0_4 = arith.constant 0 : index
    %c0_5 = arith.constant 0 : index
    %c0_6 = arith.constant 0 : index
    %2 = vector.load %arg3[%c0_4, %c0_5, %c0_6] : memref<2x8x1xf32, #tpu.memory_space<vmem>>, vector<2x8x1xf32>
    %c0_7 = arith.constant 0 : index
    %c0_8 = arith.constant 0 : index
    %3 = vector.load %arg4[%c0_7, %c0_8] : memref<32x32xbf16, #tpu.memory_space<vmem>>, vector<32x32xbf16>
    %cst = arith.constant dense<0.000000e+00> : vector<16x32xf32>
    %4 = tpu.matmul %0, %3, %cst {dimension_numbers = #tpu.dot_dimension_numbers<[1], [0], [0], [1], [0, 0, 1, 1], [], []>} : vector<16x32xbf16>, vector<32x32xbf16>, vector<16x32xf32> -> vector<16x32xf32>
    %c0_9 = arith.constant 0 : index
    %c0_10 = arith.constant 0 : index
    %5 = vector.load %arg7[%c0_9, %c0_10] : memref<1x32xf32, #tpu.memory_space<vmem>>, vector<1x32xf32>
    %6 = vector.broadcast %5 : vector<1x32xf32> to vector<16x32xf32>
    %7 = arith.addf %4, %6 : vector<16x32xf32>
    %8 = vector.shape_cast %7 : vector<16x32xf32> to vector<2x8x32xf32>
    %c0_11 = arith.constant 0 : index
    %c0_12 = arith.constant 0 : index
    %9 = vector.load %arg5[%c0_11, %c0_12] : memref<32x32xbf16, #tpu.memory_space<vmem>>, vector<32x32xbf16>
    %cst_13 = arith.constant dense<0.000000e+00> : vector<16x32xf32>
    %10 = tpu.matmul %0, %9, %cst_13 {dimension_numbers = #tpu.dot_dimension_numbers<[1], [0], [0], [1], [0, 0, 1, 1], [], []>} : vector<16x32xbf16>, vector<32x32xbf16>, vector<16x32xf32> -> vector<16x32xf32>
    %c0_14 = arith.constant 0 : index
    %c0_15 = arith.constant 0 : index
    %11 = vector.load %arg8[%c0_14, %c0_15] : memref<1x32xf32, #tpu.memory_space<vmem>>, vector<1x32xf32>
    %12 = vector.broadcast %11 : vector<1x32xf32> to vector<16x32xf32>
    %13 = arith.addf %10, %12 : vector<16x32xf32>
    %14 = vector.shape_cast %13 : vector<16x32xf32> to vector<2x8x32xf32>
    %c0_16 = arith.constant 0 : index
    %c0_17 = arith.constant 0 : index
    %15 = vector.load %arg6[%c0_16, %c0_17] : memref<32x32xbf16, #tpu.memory_space<vmem>>, vector<32x32xbf16>
    %cst_18 = arith.constant dense<0.000000e+00> : vector<16x32xf32>
    %16 = tpu.matmul %0, %15, %cst_18 {dimension_numbers = #tpu.dot_dimension_numbers<[1], [0], [0], [1], [0, 0, 1, 1], [], []>} : vector<16x32xbf16>, vector<32x32xbf16>, vector<16x32xf32> -> vector<16x32xf32>
    %c0_19 = arith.constant 0 : index
    %c0_20 = arith.constant 0 : index
    %17 = vector.load %arg9[%c0_19, %c0_20] : memref<1x32xf32, #tpu.memory_space<vmem>>, vector<1x32xf32>
    %18 = vector.broadcast %17 : vector<1x32xf32> to vector<16x32xf32>
    %19 = arith.addf %16, %18 : vector<16x32xf32>
    %20 = vector.shape_cast %19 : vector<16x32xf32> to vector<2x8x32xf32>
    "tpu.trace_start"() <{level = 10 : i32, message = "btd,bsd->bts"}> : () -> ()
    %cst_21 = arith.constant dense<0.000000e+00> : vector<2x8x8xf32>
    %21 = tpu.matmul %8, %14, %cst_21 {dimension_numbers = #tpu.dot_dimension_numbers<[2], [2], [1], [1], [0, 0, 0, 1, 1, 1], [0], [0]>} : vector<2x8x32xf32>, vector<2x8x32xf32>, vector<2x8x8xf32> -> vector<2x8x8xf32>
    %cst_22 = arith.constant 0.000000e+00 : f32
    "tpu.trace_stop"() : () -> ()
    %22 = vector.broadcast %cst_22 : f32 to vector<2x1x8xf32>
    %23 = arith.cmpf ogt, %1, %22 : vector<2x1x8xf32>
    %cst_23 = arith.constant -3.40282347E+38 : f32
    %24 = vector.shape_cast %23 : vector<2x1x8xi1> to vector<2x1x8xi1>
    %25 = vector.broadcast %24 : vector<2x1x8xi1> to vector<2x8x8xi1>
    %26 = vector.broadcast %cst_23 : f32 to vector<2x8x8xf32>
    %27 = arith.select %25, %21, %26 : vector<2x8x8xi1>, vector<2x8x8xf32>
    %cst_24 = arith.constant dense<0xFF800000> : vector<2x8xf32>
    %28 = vector.multi_reduction <maximumf>, %27, %cst_24 [2] : vector<2x8x8xf32> to vector<2x8xf32>
    %29 = vector.shape_cast %28 : vector<2x8xf32> to vector<2x8x1xf32>
    %30 = vector.broadcast %29 : vector<2x8x1xf32> to vector<2x8x8xf32>
    %31 = arith.subf %27, %30 : vector<2x8x8xf32>
    %32 = math.exp %31 : vector<2x8x8xf32>
    %cst_25 = arith.constant dense<0.000000e+00> : vector<2x8xf32>
    %33 = vector.multi_reduction <add>, %32, %cst_25 [2] : vector<2x8x8xf32> to vector<2x8xf32>
    %34 = vector.shape_cast %33 : vector<2x8xf32> to vector<2x8x1xf32>
    %35 = tpu.reciprocal %34 {approx = true} : vector<2x8x1xf32> -> vector<2x8x1xf32>
    %36 = vector.broadcast %35 : vector<2x8x1xf32> to vector<2x8x8xf32>
    %37 = arith.mulf %32, %36 : vector<2x8x8xf32>
    "tpu.trace_start"() <{level = 10 : i32, message = "bts,bsd->btd"}> : () -> ()
    %cst_26 = arith.constant dense<0.000000e+00> : vector<2x8x32xf32>
    %38 = tpu.matmul %37, %20, %cst_26 {dimension_numbers = #tpu.dot_dimension_numbers<[2], [1], [1], [2], [0, 0, 0, 1, 1, 2], [0], [0]>} : vector<2x8x8xf32>, vector<2x8x32xf32>, vector<2x8x32xf32> -> vector<2x8x32xf32>
    "tpu.trace_stop"() : () -> ()
    %c0_27 = arith.constant 0 : index
    %c0_28 = arith.constant 0 : index
    %39 = vector.load %arg10[%c0_27, %c0_28] : memref<1x32xf32, #tpu.memory_space<vmem>>, vector<1x32xf32>
    %40 = vector.shape_cast %39 : vector<1x32xf32> to vector<1x1x32xf32>
    %41 = vector.broadcast %40 : vector<1x1x32xf32> to vector<2x8x32xf32>
    %42 = arith.mulf %38, %41 : vector<2x8x32xf32>
    %cst_29 = arith.constant dense<0.000000e+00> : vector<2x8xf32>
    %43 = vector.multi_reduction <add>, %42, %cst_29 [2] : vector<2x8x32xf32> to vector<2x8xf32>
    %44 = vector.shape_cast %43 : vector<2x8xf32> to vector<2x8x1xf32>
    %c0_30 = arith.constant 0 : index
    %c0_31 = arith.constant 0 : index
    %45 = vector.load %arg11[%c0_30, %c0_31] : memref<1x1xf32, #tpu.memory_space<vmem>>, vector<1x1xf32>
    %46 = vector.shape_cast %45 : vector<1x1xf32> to vector<1x1x1xf32>
    %47 = vector.broadcast %46 : vector<1x1x1xf32> to vector<2x8x1xf32>
    %48 = arith.addf %44, %47 : vector<2x8x1xf32>
    %49 = arith.mulf %48, %2 : vector<2x8x1xf32>
    %cst_32 = arith.constant dense<0xFF800000> : vector<2x1xf32>
    %50 = vector.multi_reduction <maximumf>, %49, %cst_32 [1] : vector<2x8x1xf32> to vector<2x1xf32>
    %51 = vector.shape_cast %50 : vector<2x1xf32> to vector<2x1x1xf32>
    %52 = vector.broadcast %51 : vector<2x1x1xf32> to vector<2x8x1xf32>
    %53 = arith.subf %49, %52 : vector<2x8x1xf32>
    %54 = math.exp %53 : vector<2x8x1xf32>
    %cst_33 = arith.constant dense<0.000000e+00> : vector<2x1xf32>
    %55 = vector.multi_reduction <add>, %54, %cst_33 [1] : vector<2x8x1xf32> to vector<2x1xf32>
    %56 = vector.shape_cast %55 : vector<2x1xf32> to vector<2x1x1xf32>
    %57 = tpu.reciprocal %56 {approx = true} : vector<2x1x1xf32> -> vector<2x1x1xf32>
    %58 = vector.broadcast %57 : vector<2x1x1xf32> to vector<2x8x1xf32>
    %59 = arith.mulf %54, %58 : vector<2x8x1xf32>
    %60 = arith.mulf %59, %2 : vector<2x8x1xf32>
    %cst_34 = arith.constant dense<0.000000e+00> : vector<2x1xf32>
    %61 = vector.multi_reduction <add>, %60, %cst_34 [1] : vector<2x8x1xf32> to vector<2x1xf32>
    %62 = vector.shape_cast %61 : vector<2x1xf32> to vector<2x1x1xf32>
    %cst_35 = arith.constant 9.99999982E-14 : f32
    %63 = vector.broadcast %cst_35 : f32 to vector<2x1x1xf32>
    %64 = arith.addf %62, %63 : vector<2x1x1xf32>
    %65 = tpu.reciprocal %64 {approx = true} : vector<2x1x1xf32> -> vector<2x1x1xf32>
    %66 = vector.broadcast %65 : vector<2x1x1xf32> to vector<2x8x1xf32>
    %67 = arith.mulf %60, %66 : vector<2x8x1xf32>
    %68 = arith.extf %0 : vector<16x32xbf16> to vector<16x32xf32>
    %69 = vector.shape_cast %68 : vector<16x32xf32> to vector<2x8x32xf32>
    %70 = vector.broadcast %67 : vector<2x8x1xf32> to vector<2x8x32xf32>
    %71 = arith.mulf %70, %69 : vector<2x8x32xf32>
    %cst_36 = arith.constant dense<0.000000e+00> : vector<2x32xf32>
    %72 = vector.multi_reduction <add>, %71, %cst_36 [1] : vector<2x8x32xf32> to vector<2x32xf32>
    %c0_37 = arith.constant 0 : index
    %c0_38 = arith.constant 0 : index
    %73 = vector.load %arg12[%c0_37, %c0_38] : memref<2x32xf32, #tpu.memory_space<vmem>>, vector<2x32xf32>
    tpu.vector_store %arg12[%c0_37, %c0_38], %72 {strides = array<i32>} : memref<2x32xf32, #tpu.memory_space<vmem>>, vector<2x32xf32>,
    return
  }
  func.func @transform_0(%arg0: i32) -> (i32, i32) {
    %c0_i32 = arith.constant 0 : i32
    %c0_i32_0 = arith.constant 0 : i32
    return %arg0, %c0_i32 : i32, i32
  }
  func.func @transform_1(%arg0: i32) -> (i32, i32, i32) {
    %c0_i32 = arith.constant 0 : i32
    %c0_i32_0 = arith.constant 0 : i32
    %c0_i32_1 = arith.constant 0 : i32
    return %arg0, %c0_i32, %c0_i32_0 : i32, i32, i32
  }
  func.func @transform_2(%arg0: i32) -> (i32, i32, i32) {
    %c0_i32 = arith.constant 0 : i32
    %c0_i32_0 = arith.constant 0 : i32
    %c0_i32_1 = arith.constant 0 : i32
    return %arg0, %c0_i32, %c0_i32_0 : i32, i32, i32
  }
  func.func @transform_3(%arg0: i32) -> (i32, i32) {
    %c0_i32 = arith.constant 0 : i32
    %c0_i32_0 = arith.constant 0 : i32
    %c0_i32_1 = arith.constant 0 : i32
    return %c0_i32, %c0_i32_0 : i32, i32
  }
  func.func @transform_4(%arg0: i32) -> (i32, i32) {
    %c0_i32 = arith.constant 0 : i32
    %c0_i32_0 = arith.constant 0 : i32
    %c0_i32_1 = arith.constant 0 : i32
    return %c0_i32, %c0_i32_0 : i32, i32
  }
  func.func @transform_5(%arg0: i32) -> (i32, i32) {
    %c0_i32 = arith.constant 0 : i32
    %c0_i32_0 = arith.constant 0 : i32
    %c0_i32_1 = arith.constant 0 : i32
    return %c0_i32, %c0_i32_0 : i32, i32
  }
  func.func @transform_6(%arg0: i32) -> (i32, i32) {
    %c0_i32 = arith.constant 0 : i32
    %c0_i32_0 = arith.constant 0 : i32
    %c0_i32_1 = arith.constant 0 : i32
    return %c0_i32, %c0_i32_0 : i32, i32
  }
  func.func @transform_7(%arg0: i32) -> (i32, i32) {
    %c0_i32 = arith.constant 0 : i32
    %c0_i32_0 = arith.constant 0 : i32
    %c0_i32_1 = arith.constant 0 : i32
    return %c0_i32, %c0_i32_0 : i32, i32
  }
  func.func @transform_8(%arg0: i32) -> (i32, i32) {
    %c0_i32 = arith.constant 0 : i32
    %c0_i32_0 = arith.constant 0 : i32
    %c0_i32_1 = arith.constant 0 : i32
    return %c0_i32, %c0_i32_0 : i32, i32
  }
  func.func @transform_9(%arg0: i32) -> (i32, i32) {
    %c0_i32 = arith.constant 0 : i32
    %c0_i32_0 = arith.constant 0 : i32
    %c0_i32_1 = arith.constant 0 : i32
    return %c0_i32, %c0_i32_0 : i32, i32
  }
  func.func @transform_10(%arg0: i32) -> (i32, i32) {
    %c0_i32 = arith.constant 0 : i32
    %c0_i32_0 = arith.constant 0 : i32
    %c0_i32_1 = arith.constant 0 : i32
    return %c0_i32, %c0_i32_0 : i32, i32
  }
  func.func @transform_11(%arg0: i32) -> (i32, i32) {
    %c0_i32 = arith.constant 0 : i32
    %c0_i32_0 = arith.constant 0 : i32
    return %arg0, %c0_i32 : i32, i32
  }
}

</mosaic_0001>

<llo_original>
// kernel: tpu_custom_call.1
$region0: #{tpu_custom_call.1}
  #allocation0 [shape = 'u32[]', space=smem, size = 0x4, offset = 0x4, fixed_abs, tag = 'smem constant byte address 0x4 - core index']
  #allocation1 [shape = 'u32[144,128]{1,0:T(1,128)}', space=vmem, size = 0x12000, scoped, tag = 'internal scratch']
  #allocation2 [shape = 'f32[1,1]{1,0:T(1,128)S(1)}', space=vmem, size = 0x200, scoped, tag = 'scoped memory for tpu_custom_call.1']
  %s0 = inlined_call_operand.hbm [shape: bf16[16,32], index: 0, kind: input, shape index: {}]
  %s1 = inlined_call_operand.hbm [shape: f32[2,1,8], index: 1, kind: input, shape index: {}]
  %s2 = inlined_call_operand.vmem [shape: f32[2,8,1], index: 2, kind: input, shape index: {}]
  %s3 = inlined_call_operand.vmem [shape: bf16[32,32], index: 3, kind: input, shape index: {}]
  %s4 = inlined_call_operand.vmem [shape: bf16[32,32], index: 4, kind: input, shape index: {}]
  %s5 = inlined_call_operand.hbm [shape: bf16[32,32], index: 5, kind: input, shape index: {}]
  %s6 = inlined_call_operand.vmem [shape: f32[1,32], index: 6, kind: input, shape index: {}]
  %s7 = inlined_call_operand.vmem [shape: f32[1,32], index: 7, kind: input, shape index: {}]
  %s8 = inlined_call_operand.vmem [shape: f32[1,32], index: 8, kind: input, shape index: {}]
  %s9 = inlined_call_operand.vmem [shape: f32[1,32], index: 9, kind: input, shape index: {}]
  %s10 = inlined_call_operand.<no memory space> [shape: f32[1,1], index: 10, kind: input, shape index: {}]
  %s11 = inlined_call_operand.hbm [shape: f32[2,32], index: 11, kind: output, shape index: {}]
  %s12 = sld [smem:[#allocation0]]
  $region66: #{tpu_custom_call.1} parent=0
    _
  %s14 = ssub.s32 1, %s12
  %s15 = scalar_select 0, %s14, %s12
  %v16 = vstv %s10
  %17 = vst [vmem:[#allocation2] sm:$0x1] %v16
  $region1: #{tpu_custom_call.1} parent=0
    #allocation3 [shape = 'u8[4096]{0}', space=vmem, size = 0x1000, scoped, tag = 'input window, operand 0, single buffered']
    #allocation4 [shape = 's32[1]{0}', space=sflag, size = 0x4, scoped, tag = 'scoped memory for tpu_custom_call.1']
    #allocation5 [shape = 's32[1]{0}', space=sflag, size = 0x4, scoped, tag = 'scoped memory for tpu_custom_call.1']
    #allocation6 [shape = 'u8[1024]{0}', space=vmem, size = 0x400, scoped, tag = 'input window, operand 1, single buffered']
    #allocation7 [shape = 's32[1]{0}', space=sflag, size = 0x4, scoped, tag = 'scoped memory for tpu_custom_call.1']
    #allocation8 [shape = 'u8[8192]{0}', space=vmem, size = 0x2000, scoped, tag = 'input window, operand 5, single buffered']
    #allocation9 [shape = 'u8[1024]{0}', space=vmem, size = 0x400, scoped, tag = 'output window, operand 0, single buffered']
    %18 = vsyncpa [#allocation4], 0
    %19 = vsyncpa [#allocation7], 0
    %20 = vsyncpa [#allocation5], 0
    // Predicated region
    $region2: #{tpu_custom_call.1} parent=1 // pred_check
      _
    $region3: #{tpu_custom_call.1} parent=1 // pred_check_branch
      %22 = sbr.rel (0) target = $region5
    $region4: #{tpu_custom_call.1} parent=1 // pred_region
      %s24 = ssub.s32 128, 128
      %25 = vsyncadd [#allocation4], %s24
      %s26 = sshll.u32 [#allocation3], 4
      %s27 = int_to_ptr.vmem [resolvable:$true] %s26
      %32 = dma.hbm_to_vmem [thread:$0]  %s0, 128, %s27, [#allocation4], 64, 64, 4
    $region5: #{tpu_custom_call.1} parent=1 // pred_fallthru
      _
    // Predicated region
    $region6: #{tpu_custom_call.1} parent=1 // pred_check
      _
    $region7: #{tpu_custom_call.1} parent=1 // pred_check_branch
      %34 = sbr.rel (0) target = $region9
    $region8: #{tpu_custom_call.1} parent=1 // pred_region
      %s36 = ssub.s32 32, 32
      %37 = vsyncadd [#allocation7], %s36
      %s38 = sshll.u32 [#allocation6], 4
      %s39 = int_to_ptr.vmem [resolvable:$true] %s38
      %44 = dma.hbm_to_vmem [thread:$0]  %s1, 32, %s39, [#allocation7], 16, 16, 1
    $region9: #{tpu_custom_call.1} parent=1 // pred_fallthru
      _
    // Predicated region
    $region10: #{tpu_custom_call.1} parent=1 // pred_check
      _
    $region11: #{tpu_custom_call.1} parent=1 // pred_check_branch
      %46 = sbr.rel (0) target = $region13
    $region12: #{tpu_custom_call.1} parent=1 // pred_region
      _
    $region13: #{tpu_custom_call.1} parent=1 // pred_fallthru
      _
    // Predicated region
    $region14: #{tpu_custom_call.1} parent=1 // pred_check
      _
    $region15: #{tpu_custom_call.1} parent=1 // pred_check_branch
      %48 = sbr.rel (0) target = $region17
    $region16: #{tpu_custom_call.1} parent=1 // pred_region
      _
    $region17: #{tpu_custom_call.1} parent=1 // pred_fallthru
      _
    // Predicated region
    $region18: #{tpu_custom_call.1} parent=1 // pred_check
      _
    $region19: #{tpu_custom_call.1} parent=1 // pred_check_branch
      %50 = sbr.rel (0) target = $region21
    $region20: #{tpu_custom_call.1} parent=1 // pred_region
      _
    $region21: #{tpu_custom_call.1} parent=1 // pred_fallthru
      _
    // Predicated region
    $region22: #{tpu_custom_call.1} parent=1 // pred_check
      _
    $region23: #{tpu_custom_call.1} parent=1 // pred_check_branch
      %52 = sbr.rel (0) target = $region25
    $region24: #{tpu_custom_call.1} parent=1 // pred_region
      %s54 = ssub.s32 256, 256
      %55 = vsyncadd [#allocation7], %s54
      %s56 = sshll.u32 [#allocation8], 4
      %s57 = int_to_ptr.vmem [resolvable:$true] %s56
      %62 = dma.hbm_to_vmem [thread:$0]  %s5, 256, %s57, [#allocation7], 64, 64, 4
    $region25: #{tpu_custom_call.1} parent=1 // pred_fallthru
      _
    // Predicated region
    $region26: #{tpu_custom_call.1} parent=1 // pred_check
      _
    $region27: #{tpu_custom_call.1} parent=1 // pred_check_branch
      %64 = sbr.rel (0) target = $region29
    $region28: #{tpu_custom_call.1} parent=1 // pred_region
      _
    $region29: #{tpu_custom_call.1} parent=1 // pred_fallthru
      _
    // Predicated region
    $region30: #{tpu_custom_call.1} parent=1 // pred_check
      _
    $region31: #{tpu_custom_call.1} parent=1 // pred_check_branch
      %66 = sbr.rel (0) target = $region33
    $region32: #{tpu_custom_call.1} parent=1 // pred_region
      _
    $region33: #{tpu_custom_call.1} parent=1 // pred_fallthru
      _
    // Predicated region
    $region34: #{tpu_custom_call.1} parent=1 // pred_check
      _
    $region35: #{tpu_custom_call.1} parent=1 // pred_check_branch
      %68 = sbr.rel (0) target = $region37
    $region36: #{tpu_custom_call.1} parent=1 // pred_region
      _
    $region37: #{tpu_custom_call.1} parent=1 // pred_fallthru
      _
    // Predicated region
    $region38: #{tpu_custom_call.1} parent=1 // pred_check
      _
    $region39: #{tpu_custom_call.1} parent=1 // pred_check_branch
      %70 = sbr.rel (0) target = $region41
    $region40: #{tpu_custom_call.1} parent=1 // pred_region
      _
    $region41: #{tpu_custom_call.1} parent=1 // pred_fallthru
      _
    // Predicated region
    $region42: #{tpu_custom_call.1} parent=1 // pred_check
      _
    $region43: #{tpu_custom_call.1} parent=1 // pred_check_branch
      %72 = sbr.rel (0) target = $region45
    $region44: #{tpu_custom_call.1} parent=1 // pred_region
      _
    $region45: #{tpu_custom_call.1} parent=1 // pred_fallthru
      _
    // Predicated region
    $region46: #{tpu_custom_call.1} parent=1 // pred_check
      _
    $region47: #{tpu_custom_call.1} parent=1 // pred_check_branch
      %74 = sbr.rel (0) target = $region49
    $region48: #{tpu_custom_call.1} parent=1 // pred_region
      %75 = dma.done [#allocation4], 128
    $region49: #{tpu_custom_call.1} parent=1 // pred_fallthru
      _
    // Predicated region
    $region50: #{tpu_custom_call.1} parent=1 // pred_check
      _
    $region51: #{tpu_custom_call.1} parent=1 // pred_check_branch
      %77 = sbr.rel (0) target = $region53
    $region52: #{tpu_custom_call.1} parent=1 // pred_region
      %78 = dma.done [#allocation7], 32
    $region53: #{tpu_custom_call.1} parent=1 // pred_fallthru
      _
    // Predicated region
    $region54: #{tpu_custom_call.1} parent=1 // pred_check
      _
    $region55: #{tpu_custom_call.1} parent=1 // pred_check_branch
      %80 = sbr.rel (0) target = $region57
    $region56: #{tpu_custom_call.1} parent=1 // pred_region
      %81 = dma.done [#allocation7], 256
    $region57: #{tpu_custom_call.1} parent=1 // pred_fallthru
      _
    %v83 = vld [vmem:[#allocation3] sm:$0xf]
    %v84 = vld [vmem:[#allocation3 + $0x4] sm:$0xf]
    %v85 = vld [vmem:[#allocation6] sm:$0x1]
    %v86 = vld [vmem:[#allocation6 + $0x1] sm:$0x1]
    %v87 = vld [vmem:[%s2] sm:$0xff]
    %v88 = vld [vmem:[%s2 + $0x8] sm:$0xff]
    %v89 = vld [vmem:[%s3] sm:$0xf]
    %v90 = vld [vmem:[%s3 + $0x4] sm:$0xf]
    %v91 = vld [vmem:[%s3 + $0x8] sm:$0xf]
    %v92 = vld [vmem:[%s3 + $0xc] sm:$0xf]
    %v93 = vld [vmem:[%s6] sm:$0x1]
    %v95 = vlaneseq
    %v96 = vshrl.u32 %v95, 7
    %v97 = vsub.s32 0, %v96
    %v98 = vrot.slane %v93, %v97
    %v102 = vunpack.c.l.b16 %v83
    %v103 = vunpack.c.l.b16 %v84
    %v104 = vpack.c.b16 %v103, %v102
    %v109 = vunpack.c.l.b16 %v89
    %v110 = vunpack.c.l.b16 %v90
    %v111 = vunpack.c.l.b16 %v91
    %v112 = vunpack.c.l.b16 %v92
    %v113 = vpack.c.b16 %v110, %v109
    %v114 = vpack.c.b16 %v112, %v111
    %vm117 = vcmask 261120
    %v119 = vsel %vm117, %v104, 0
    %121 = vmatprep.subr.bf16.mxu0 0
    %122 = vmatpush1.bf16.msra.mxu0 %v113
    %123 = vmatprep.subr.bf16.mxu0 0
    %124 = vmatpush1.bf16.msra.mxu0 %v114
    %125 = vmatprep.subr.bf16.mxu0 0
    %126 = vmatpush1.bf16.msra.mxu0 0
    %127 = vmatprep.subr.bf16.mxu0 0
    %128 = vmatpush1.bf16.msra.mxu0 0
    %129 = vmatprep.subr.bf16.mxu0 0
    %130 = vmatpush1.bf16.msra.mxu0 0
    %131 = vmatprep.subr.bf16.mxu0 0
    %132 = vmatpush1.bf16.msra.mxu0 0
    %133 = vmatprep.subr.bf16.mxu0 0
    %134 = vmatpush1.bf16.msra.mxu0 0
    %135 = vmatprep.subr.bf16.mxu0 0
    %136 = vmatpush1.bf16.msra.mxu0 0
    %137 = vmatprep.subr.bf16.mxu0 0
    %138 = vmatpush1.bf16.msra.mxu0 0
    %139 = vmatprep.subr.bf16.mxu0 0
    %140 = vmatpush1.bf16.msra.mxu0 0
    %141 = vmatprep.subr.bf16.mxu0 0
    %142 = vmatpush1.bf16.msra.mxu0 0
    %143 = vmatprep.subr.bf16.mxu0 0
    %144 = vmatpush1.bf16.msra.mxu0 0
    %145 = vmatprep.subr.bf16.mxu0 0
    %146 = vmatpush1.bf16.msra.mxu0 0
    %147 = vmatprep.subr.bf16.mxu0 0
    %148 = vmatpush1.bf16.msra.mxu0 0
    %149 = vmatprep.subr.bf16.mxu0 0
    %150 = vmatpush1.bf16.msra.mxu0 0
    %151 = vmatprep.subr.bf16.mxu0 0
    %152 = vmatpush1.bf16.msra.mxu0 0
    %153 = vmatprep.mubr.bf16.mxu0 0
    %154 = vmatmul.mubr.bf16.gmra.mrb[0].mxu0 %v119
    %v155 = vpop.f32.mrb[0].mxu0
    %v156 = vadd.f32 %v98, %v155
    %v157 = vpop.f32.mrb[0].mxu0
    %v158 = vpop.f32.mrb[0].mxu0
    %v159 = vadd.f32 %v98, %v158
    %v160 = vpop.f32.mrb[0].mxu0
    %161 = vdwg.mxu0
    %v162 = vld [vmem:[%s4] sm:$0xf]
    %v163 = vld [vmem:[%s4 + $0x4] sm:$0xf]
    %v164 = vld [vmem:[%s4 + $0x8] sm:$0xf]
    %v165 = vld [vmem:[%s4 + $0xc] sm:$0xf]
    %v166 = vld [vmem:[%s7] sm:$0x1]
    %v168 = vlaneseq
    %v169 = vshrl.u32 %v168, 7
    %v170 = vsub.s32 0, %v169
    %v171 = vrot.slane %v166, %v170
    %v177 = vunpack.c.l.b16 %v162
    %v178 = vunpack.c.l.b16 %v163
    %v179 = vunpack.c.l.b16 %v164
    %v180 = vunpack.c.l.b16 %v165
    %v181 = vpack.c.b16 %v178, %v177
    %v182 = vpack.c.b16 %v180, %v179
    %185 = vmatprep.subr.bf16.mxu0 0
    %186 = vmatpush1.bf16.msra.mxu0 %v181
    %187 = vmatprep.subr.bf16.mxu0 0
    %188 = vmatpush1.bf16.msra.mxu0 %v182
    %189 = vmatprep.subr.bf16.mxu0 0
    %190 = vmatpush1.bf16.msra.mxu0 0
    %191 = vmatprep.subr.bf16.mxu0 0
    %192 = vmatpush1.bf16.msra.mxu0 0
    %193 = vmatprep.subr.bf16.mxu0 0
    %194 = vmatpush1.bf16.msra.mxu0 0
    %195 = vmatprep.subr.bf16.mxu0 0
    %196 = vmatpush1.bf16.msra.mxu0 0
    %197 = vmatprep.subr.bf16.mxu0 0
    %198 = vmatpush1.bf16.msra.mxu0 0
    %199 = vmatprep.subr.bf16.mxu0 0
    %200 = vmatpush1.bf16.msra.mxu0 0
    %201 = vmatprep.subr.bf16.mxu0 0
    %202 = vmatpush1.bf16.msra.mxu0 0
    %203 = vmatprep.subr.bf16.mxu0 0
    %204 = vmatpush1.bf16.msra.mxu0 0
    %205 = vmatprep.subr.bf16.mxu0 0
    %206 = vmatpush1.bf16.msra.mxu0 0
    %207 = vmatprep.subr.bf16.mxu0 0
    %208 = vmatpush1.bf16.msra.mxu0 0
    %209 = vmatprep.subr.bf16.mxu0 0
    %210 = vmatpush1.bf16.msra.mxu0 0
    %211 = vmatprep.subr.bf16.mxu0 0
    %212 = vmatpush1.bf16.msra.mxu0 0
    %213 = vmatprep.subr.bf16.mxu0 0
    %214 = vmatpush1.bf16.msra.mxu0 0
    %215 = vmatprep.subr.bf16.mxu0 0
    %216 = vmatpush1.bf16.msra.mxu0 0
    %217 = vmatprep.mubr.bf16.mxu0 0
    %218 = vmatmul.mubr.bf16.gmra.mrb[0].mxu0 %v119
    %v219 = vpop.f32.mrb[0].mxu0
    %v220 = vadd.f32 %v171, %v219
    %v221 = vpop.f32.mrb[0].mxu0
    %v222 = vpop.f32.mrb[0].mxu0
    %v223 = vadd.f32 %v171, %v222
    %v224 = vpop.f32.mrb[0].mxu0
    %225 = vdwg.mxu0
    %v226 = vld [vmem:[#allocation8] sm:$0xf]
    %v227 = vld [vmem:[#allocation8 + $0x4] sm:$0xf]
    %v228 = vld [vmem:[#allocation8 + $0x8] sm:$0xf]
    %v229 = vld [vmem:[#allocation8 + $0xc] sm:$0xf]
    %v230 = vld [vmem:[%s8] sm:$0x1]
    %v232 = vlaneseq
    %v233 = vshrl.u32 %v232, 7
    %v234 = vsub.s32 0, %v233
    %v235 = vrot.slane %v230, %v234
    %v241 = vunpack.c.l.b16 %v226
    %v242 = vunpack.c.l.b16 %v227
    %v243 = vunpack.c.l.b16 %v228
    %v244 = vunpack.c.l.b16 %v229
    %v245 = vpack.c.b16 %v242, %v241
    %v246 = vpack.c.b16 %v244, %v243
    %249 = vmatprep.subr.bf16.mxu0 0
    %250 = vmatpush1.bf16.msra.mxu0 %v245
    %251 = vmatprep.subr.bf16.mxu0 0
    %252 = vmatpush1.bf16.msra.mxu0 %v246
    %253 = vmatprep.subr.bf16.mxu0 0
    %254 = vmatpush1.bf16.msra.mxu0 0
    %255 = vmatprep.subr.bf16.mxu0 0
    %256 = vmatpush1.bf16.msra.mxu0 0
    %257 = vmatprep.subr.bf16.mxu0 0
    %258 = vmatpush1.bf16.msra.mxu0 0
    %259 = vmatprep.subr.bf16.mxu0 0
    %260 = vmatpush1.bf16.msra.mxu0 0
    %261 = vmatprep.subr.bf16.mxu0 0
    %262 = vmatpush1.bf16.msra.mxu0 0
    %263 = vmatprep.subr.bf16.mxu0 0
    %264 = vmatpush1.bf16.msra.mxu0 0
    %265 = vmatprep.subr.bf16.mxu0 0
    %266 = vmatpush1.bf16.msra.mxu0 0
    %267 = vmatprep.subr.bf16.mxu0 0
    %268 = vmatpush1.bf16.msra.mxu0 0
    %269 = vmatprep.subr.bf16.mxu0 0
    %270 = vmatpush1.bf16.msra.mxu0 0
    %271 = vmatprep.subr.bf16.mxu0 0
    %272 = vmatpush1.bf16.msra.mxu0 0
    %273 = vmatprep.subr.bf16.mxu0 0
    %274 = vmatpush1.bf16.msra.mxu0 0
    %275 = vmatprep.subr.bf16.mxu0 0
    %276 = vmatpush1.bf16.msra.mxu0 0
    %277 = vmatprep.subr.bf16.mxu0 0
    %278 = vmatpush1.bf16.msra.mxu0 0
    %279 = vmatprep.subr.bf16.mxu0 0
    %280 = vmatpush1.bf16.msra.mxu0 0
    %281 = vmatprep.mubr.bf16.mxu0 0
    %282 = vmatmul.mubr.bf16.gmra.mrb[0].mxu0 %v119
    %v283 = vpop.f32.mrb[0].mxu0
    %v284 = vadd.f32 %v235, %v283
    %v285 = vpop.f32.mrb[0].mxu0
    %v286 = vpop.f32.mrb[0].mxu0
    %v287 = vadd.f32 %v235, %v286
    %v288 = vpop.f32.mrb[0].mxu0
    %289 = vdwg.mxu0
    %v291 = vsel %vm117, %v156, 0
    %v294 = vsel %vm117, %v220, 0
    %296 = vmatprep.subr.mxu0 0.0
    %297 = vmatpush1.xpose.msra.mxu0 %v294
    %298 = vmatprep.subr.mxu0 0.0
    %299 = vmatpush1.xpose.msra.mxu0 0.0
    %300 = vmatprep.subr.mxu0 0.0
    %301 = vmatpush1.xpose.msra.mxu0 0.0
    %302 = vmatprep.subr.mxu0 0.0
    %303 = vmatpush1.xpose.msra.mxu0 0.0
    %304 = vmatprep.subr.mxu0 0.0
    %305 = vmatpush1.xpose.msra.mxu0 0.0
    %306 = vmatprep.subr.mxu0 0.0
    %307 = vmatpush1.xpose.msra.mxu0 0.0
    %308 = vmatprep.subr.mxu0 0.0
    %309 = vmatpush1.xpose.msra.mxu0 0.0
    %310 = vmatprep.subr.mxu0 0.0
    %311 = vmatpush1.xpose.msra.mxu0 0.0
    %312 = vmatprep.subr.mxu0 0.0
    %313 = vmatpush1.xpose.msra.mxu0 0.0
    %314 = vmatprep.subr.mxu0 0.0
    %315 = vmatpush1.xpose.msra.mxu0 0.0
    %316 = vmatprep.subr.mxu0 0.0
    %317 = vmatpush1.xpose.msra.mxu0 0.0
    %318 = vmatprep.subr.mxu0 0.0
    %319 = vmatpush1.xpose.msra.mxu0 0.0
    %320 = vmatprep.subr.mxu0 0.0
    %321 = vmatpush1.xpose.msra.mxu0 0.0
    %322 = vmatprep.subr.mxu0 0.0
    %323 = vmatpush1.xpose.msra.mxu0 0.0
    %324 = vmatprep.subr.mxu0 0.0
    %325 = vmatpush1.xpose.msra.mxu0 0.0
    %326 = vmatprep.subr.mxu0 0.0
    %327 = vmatpush1.xpose.msra.mxu0 0.0
    %328 = vmatprep.subr.mxu0 0.0
    %329 = vmatpush1.xpose.msra.mxu0 0.0
    %330 = vmatprep.subr.mxu0 0.0
    %331 = vmatpush1.xpose.msra.mxu0 0.0
    %332 = vmatprep.subr.mxu0 0.0
    %333 = vmatpush1.xpose.msra.mxu0 0.0
    %334 = vmatprep.subr.mxu0 0.0
    %335 = vmatpush1.xpose.msra.mxu0 0.0
    %336 = vmatprep.subr.mxu0 0.0
    %337 = vmatpush1.xpose.msra.mxu0 0.0
    %338 = vmatprep.subr.mxu0 0.0
    %339 = vmatpush1.xpose.msra.mxu0 0.0
    %340 = vmatprep.subr.mxu0 0.0
    %341 = vmatpush1.xpose.msra.mxu0 0.0
    %342 = vmatprep.subr.mxu0 0.0
    %343 = vmatpush1.xpose.msra.mxu0 0.0
    %344 = vmatprep.subr.mxu0 0.0
    %345 = vmatpush1.xpose.msra.mxu0 0.0
    %346 = vmatprep.subr.mxu0 0.0
    %347 = vmatpush1.xpose.msra.mxu0 0.0
    %348 = vmatprep.subr.mxu0 0.0
    %349 = vmatpush1.xpose.msra.mxu0 0.0
    %350 = vmatprep.subr.mxu0 0.0
    %351 = vmatpush1.xpose.msra.mxu0 0.0
    %352 = vmatprep.subr.mxu0 0.0
    %353 = vmatpush1.xpose.msra.mxu0 0.0
    %354 = vmatprep.subr.mxu0 0.0
    %355 = vmatpush1.xpose.msra.mxu0 0.0
    %356 = vmatprep.subr.mxu0 0.0
    %357 = vmatpush1.xpose.msra.mxu0 0.0
    %358 = vmatprep.subr.mxu0 0.0
    %359 = vmatpush1.xpose.msra.mxu0 0.0
    %360 = vmatprep.mubr.f32.mxu0 0.0
    %361 = vmatmul.mubr.f32.gmra.mrb[0].mxu0 %v291
    %v362 = vpop.f32.mrb[0].mxu0
    %v363 = vadd.f32 0.0, %v362
    %v364 = vpop.f32.mrb[0].mxu0
    %365 = vdwg.mxu0
    %v367 = vsel %vm117, %v159, 0
    %v370 = vsel %vm117, %v223, 0
    %372 = vmatprep.subr.mxu0 0.0
    %373 = vmatpush1.xpose.msra.mxu0 %v370
    %374 = vmatprep.subr.mxu0 0.0
    %375 = vmatpush1.xpose.msra.mxu0 0.0
    %376 = vmatprep.subr.mxu0 0.0
    %377 = vmatpush1.xpose.msra.mxu0 0.0
    %378 = vmatprep.subr.mxu0 0.0
    %379 = vmatpush1.xpose.msra.mxu0 0.0
    %380 = vmatprep.subr.mxu0 0.0
    %381 = vmatpush1.xpose.msra.mxu0 0.0
    %382 = vmatprep.subr.mxu0 0.0
    %383 = vmatpush1.xpose.msra.mxu0 0.0
    %384 = vmatprep.subr.mxu0 0.0
    %385 = vmatpush1.xpose.msra.mxu0 0.0
    %386 = vmatprep.subr.mxu0 0.0
    %387 = vmatpush1.xpose.msra.mxu0 0.0
    %388 = vmatprep.subr.mxu0 0.0
    %389 = vmatpush1.xpose.msra.mxu0 0.0
    %390 = vmatprep.subr.mxu0 0.0
    %391 = vmatpush1.xpose.msra.mxu0 0.0
    %392 = vmatprep.subr.mxu0 0.0
    %393 = vmatpush1.xpose.msra.mxu0 0.0
    %394 = vmatprep.subr.mxu0 0.0
    %395 = vmatpush1.xpose.msra.mxu0 0.0
    %396 = vmatprep.subr.mxu0 0.0
    %397 = vmatpush1.xpose.msra.mxu0 0.0
    %398 = vmatprep.subr.mxu0 0.0
    %399 = vmatpush1.xpose.msra.mxu0 0.0
    %400 = vmatprep.subr.mxu0 0.0
    %401 = vmatpush1.xpose.msra.mxu0 0.0
    %402 = vmatprep.subr.mxu0 0.0
    %403 = vmatpush1.xpose.msra.mxu0 0.0
    %404 = vmatprep.subr.mxu0 0.0
    %405 = vmatpush1.xpose.msra.mxu0 0.0
    %406 = vmatprep.subr.mxu0 0.0
    %407 = vmatpush1.xpose.msra.mxu0 0.0
    %408 = vmatprep.subr.mxu0 0.0
    %409 = vmatpush1.xpose.msra.mxu0 0.0
    %410 = vmatprep.subr.mxu0 0.0
    %411 = vmatpush1.xpose.msra.mxu0 0.0
    %412 = vmatprep.subr.mxu0 0.0
    %413 = vmatpush1.xpose.msra.mxu0 0.0
    %414 = vmatprep.subr.mxu0 0.0
    %415 = vmatpush1.xpose.msra.mxu0 0.0
    %416 = vmatprep.subr.mxu0 0.0
    %417 = vmatpush1.xpose.msra.mxu0 0.0
    %418 = vmatprep.subr.mxu0 0.0
    %419 = vmatpush1.xpose.msra.mxu0 0.0
    %420 = vmatprep.subr.mxu0 0.0
    %421 = vmatpush1.xpose.msra.mxu0 0.0
    %422 = vmatprep.subr.mxu0 0.0
    %423 = vmatpush1.xpose.msra.mxu0 0.0
    %424 = vmatprep.subr.mxu0 0.0
    %425 = vmatpush1.xpose.msra.mxu0 0.0
    %426 = vmatprep.subr.mxu0 0.0
    %427 = vmatpush1.xpose.msra.mxu0 0.0
    %428 = vmatprep.subr.mxu0 0.0
    %429 = vmatpush1.xpose.msra.mxu0 0.0
    %430 = vmatprep.subr.mxu0 0.0
    %431 = vmatpush1.xpose.msra.mxu0 0.0
    %432 = vmatprep.subr.mxu0 0.0
    %433 = vmatpush1.xpose.msra.mxu0 0.0
    %434 = vmatprep.subr.mxu0 0.0
    %435 = vmatpush1.xpose.msra.mxu0 0.0
    %436 = vmatprep.mubr.f32.mxu0 0.0
    %437 = vmatmul.mubr.f32.gmra.mrb[0].mxu0 %v367
    %v438 = vpop.f32.mrb[0].mxu0
    %v439 = vadd.f32 0.0, %v438
    %v440 = vpop.f32.mrb[0].mxu0
    %441 = vdwg.mxu0
    %vm442 = vcmp.gt.f32.partialorder %v85, 0.0
    %vm443 = vcmp.gt.f32.partialorder %v86, 0.0
    %v444 = vsel %vm442, 1, 0
    %v445 = vsel %vm443, 1, 0
    %v446 = vlaneseq
    %v447 = vshrl.u32 %v446, 7
    %v448 = vsub.s32 0, %v447
    %v449 = vrot.slane %v444, %v448
    %v450 = vlaneseq
    %v451 = vshrl.u32 %v450, 7
    %v452 = vsub.s32 0, %v451
    %v453 = vrot.slane %v445, %v452
    %vm454 = vcmp.eq.s32.totalorder %v449, 1
    %vm455 = vcmp.eq.s32.totalorder %v453, 1
    %v456 = vsel %vm454, %v363, -3.4028235e+38
    %v457 = vsel %vm455, %v439, -3.4028235e+38
    %vm458 = vcmask 64512
    %v459 = vsel %vm458, %v456, -inf
    %460 = vmax.xlane.f32.xlu0 %v459
    %v461 = vpop.xlane.xlu0 %460
    %v462 = vsel %vm458, %v457, -inf
    %463 = vmax.xlane.f32.xlu0 %v462
    %v464 = vpop.xlane.xlu0 %463
    %v465 = vsub.f32 %v456, %v461
    %v466 = vsub.f32 %v457, %v464
    %v467 = vmul.f32 %v465, 1.442695
    %v468 = vpow.pop %v467
    %v469 = vmul.f32 %v466, 1.442695
    %v470 = vpow.pop %v469
    %v471 = vsel %vm458, %v468, 0.0
    %472 = vadd.xlane.f32.xlu0 %v471
    %v473 = vpop.xlane.xlu0 %472
    %v474 = vsel %vm458, %v470, 0.0
    %475 = vadd.xlane.f32.xlu0 %v474
    %v476 = vpop.xlane.xlu0 %475
    %v477 = vrcp.pop %v473
    %v478 = vrcp.pop %v476
    %v479 = vmul.f32 %v468, %v477
    %v480 = vmul.f32 %v470, %v478
    %v482 = vsel %vm458, %v479, 0
    %484 = vmatprep.subr.mxu0 0.0
    %485 = vmatpush1.msra.mxu0 %v284
    %486 = vmatprep.subr.mxu0 0.0
    %487 = vmatpush1.msra.mxu0 0.0
    %488 = vmatprep.subr.mxu0 0.0
    %489 = vmatpush1.msra.mxu0 0.0
    %490 = vmatprep.subr.mxu0 0.0
    %491 = vmatpush1.msra.mxu0 0.0
    %492 = vmatprep.subr.mxu0 0.0
    %493 = vmatpush1.msra.mxu0 0.0
    %494 = vmatprep.subr.mxu0 0.0
    %495 = vmatpush1.msra.mxu0 0.0
    %496 = vmatprep.subr.mxu0 0.0
    %497 = vmatpush1.msra.mxu0 0.0
    %498 = vmatprep.subr.mxu0 0.0
    %499 = vmatpush1.msra.mxu0 0.0
    %500 = vmatprep.subr.mxu0 0.0
    %501 = vmatpush1.msra.mxu0 0.0
    %502 = vmatprep.subr.mxu0 0.0
    %503 = vmatpush1.msra.mxu0 0.0
    %504 = vmatprep.subr.mxu0 0.0
    %505 = vmatpush1.msra.mxu0 0.0
    %506 = vmatprep.subr.mxu0 0.0
    %507 = vmatpush1.msra.mxu0 0.0
    %508 = vmatprep.subr.mxu0 0.0
    %509 = vmatpush1.msra.mxu0 0.0
    %510 = vmatprep.subr.mxu0 0.0
    %511 = vmatpush1.msra.mxu0 0.0
    %512 = vmatprep.subr.mxu0 0.0
    %513 = vmatpush1.msra.mxu0 0.0
    %514 = vmatprep.subr.mxu0 0.0
    %515 = vmatpush1.msra.mxu0 0.0
    %516 = vmatprep.subr.mxu0 0.0
    %517 = vmatpush1.msra.mxu0 0.0
    %518 = vmatprep.subr.mxu0 0.0
    %519 = vmatpush1.msra.mxu0 0.0
    %520 = vmatprep.subr.mxu0 0.0
    %521 = vmatpush1.msra.mxu0 0.0
    %522 = vmatprep.subr.mxu0 0.0
    %523 = vmatpush1.msra.mxu0 0.0
    %524 = vmatprep.subr.mxu0 0.0
    %525 = vmatpush1.msra.mxu0 0.0
    %526 = vmatprep.subr.mxu0 0.0
    %527 = vmatpush1.msra.mxu0 0.0
    %528 = vmatprep.subr.mxu0 0.0
    %529 = vmatpush1.msra.mxu0 0.0
    %530 = vmatprep.subr.mxu0 0.0
    %531 = vmatpush1.msra.mxu0 0.0
    %532 = vmatprep.subr.mxu0 0.0
    %533 = vmatpush1.msra.mxu0 0.0
    %534 = vmatprep.subr.mxu0 0.0
    %535 = vmatpush1.msra.mxu0 0.0
    %536 = vmatprep.subr.mxu0 0.0
    %537 = vmatpush1.msra.mxu0 0.0
    %538 = vmatprep.subr.mxu0 0.0
    %539 = vmatpush1.msra.mxu0 0.0
    %540 = vmatprep.subr.mxu0 0.0
    %541 = vmatpush1.msra.mxu0 0.0
    %542 = vmatprep.subr.mxu0 0.0
    %543 = vmatpush1.msra.mxu0 0.0
    %544 = vmatprep.subr.mxu0 0.0
    %545 = vmatpush1.msra.mxu0 0.0
    %546 = vmatprep.subr.mxu0 0.0
    %547 = vmatpush1.msra.mxu0 0.0
    %548 = vmatprep.mubr.f32.mxu0 0.0
    %549 = vmatmul.mubr.f32.gmra.mrb[0].mxu0 %v482
    %v550 = vpop.f32.mrb[0].mxu0
    %v551 = vadd.f32 0.0, %v550
    %v552 = vpop.f32.mrb[0].mxu0
    %553 = vdwg.mxu0
    %v555 = vsel %vm458, %v480, 0
    %557 = vmatprep.subr.mxu0 0.0
    %558 = vmatpush1.msra.mxu0 %v287
    %559 = vmatprep.subr.mxu0 0.0
    %560 = vmatpush1.msra.mxu0 0.0
    %561 = vmatprep.subr.mxu0 0.0
    %562 = vmatpush1.msra.mxu0 0.0
    %563 = vmatprep.subr.mxu0 0.0
    %564 = vmatpush1.msra.mxu0 0.0
    %565 = vmatprep.subr.mxu0 0.0
    %566 = vmatpush1.msra.mxu0 0.0
    %567 = vmatprep.subr.mxu0 0.0
    %568 = vmatpush1.msra.mxu0 0.0
    %569 = vmatprep.subr.mxu0 0.0
    %570 = vmatpush1.msra.mxu0 0.0
    %571 = vmatprep.subr.mxu0 0.0
    %572 = vmatpush1.msra.mxu0 0.0
    %573 = vmatprep.subr.mxu0 0.0
    %574 = vmatpush1.msra.mxu0 0.0
    %575 = vmatprep.subr.mxu0 0.0
    %576 = vmatpush1.msra.mxu0 0.0
    %577 = vmatprep.subr.mxu0 0.0
    %578 = vmatpush1.msra.mxu0 0.0
    %579 = vmatprep.subr.mxu0 0.0
    %580 = vmatpush1.msra.mxu0 0.0
    %581 = vmatprep.subr.mxu0 0.0
    %582 = vmatpush1.msra.mxu0 0.0
    %583 = vmatprep.subr.mxu0 0.0
    %584 = vmatpush1.msra.mxu0 0.0
    %585 = vmatprep.subr.mxu0 0.0
    %586 = vmatpush1.msra.mxu0 0.0
    %587 = vmatprep.subr.mxu0 0.0
    %588 = vmatpush1.msra.mxu0 0.0
    %589 = vmatprep.subr.mxu0 0.0
    %590 = vmatpush1.msra.mxu0 0.0
    %591 = vmatprep.subr.mxu0 0.0
    %592 = vmatpush1.msra.mxu0 0.0
    %593 = vmatprep.subr.mxu0 0.0
    %594 = vmatpush1.msra.mxu0 0.0
    %595 = vmatprep.subr.mxu0 0.0
    %596 = vmatpush1.msra.mxu0 0.0
    %597 = vmatprep.subr.mxu0 0.0
    %598 = vmatpush1.msra.mxu0 0.0
    %599 = vmatprep.subr.mxu0 0.0
    %600 = vmatpush1.msra.mxu0 0.0
    %601 = vmatprep.subr.mxu0 0.0
    %602 = vmatpush1.msra.mxu0 0.0
    %603 = vmatprep.subr.mxu0 0.0
    %604 = vmatpush1.msra.mxu0 0.0
    %605 = vmatprep.subr.mxu0 0.0
    %606 = vmatpush1.msra.mxu0 0.0
    %607 = vmatprep.subr.mxu0 0.0
    %608 = vmatpush1.msra.mxu0 0.0
    %609 = vmatprep.subr.mxu0 0.0
    %610 = vmatpush1.msra.mxu0 0.0
    %611 = vmatprep.subr.mxu0 0.0
    %612 = vmatpush1.msra.mxu0 0.0
    %613 = vmatprep.subr.mxu0 0.0
    %614 = vmatpush1.msra.mxu0 0.0
    %615 = vmatprep.subr.mxu0 0.0
    %616 = vmatpush1.msra.mxu0 0.0
    %617 = vmatprep.subr.mxu0 0.0
    %618 = vmatpush1.msra.mxu0 0.0
    %619 = vmatprep.subr.mxu0 0.0
    %620 = vmatpush1.msra.mxu0 0.0
    %621 = vmatprep.mubr.f32.mxu0 0.0
    %622 = vmatmul.mubr.f32.gmra.mrb[0].mxu0 %v555
    %v623 = vpop.f32.mrb[0].mxu0
    %v624 = vadd.f32 0.0, %v623
    %v625 = vpop.f32.mrb[0].mxu0
    %626 = vdwg.mxu0
    %v627 = vld [vmem:[%s9] sm:$0x1]
    %v629 = vlaneseq
    %v630 = vshrl.u32 %v629, 7
    %v631 = vsub.s32 0, %v630
    %v632 = vrot.slane %v627, %v631
    %v634 = vmul.f32 %v551, %v632
    %v635 = vmul.f32 %v624, %v632
    %v636 = vsel %vm117, %v634, 0.0
    %637 = vadd.xlane.f32.xlu0 %v636
    %v638 = vpop.xlane.xlu0 %637
    %v639 = vsel %vm117, %v635, 0.0
    %640 = vadd.xlane.f32.xlu0 %v639
    %v641 = vpop.xlane.xlu0 %640
    %v642 = vld [vmem:[#allocation2] sm:$0x1]
    %v644 = vlaneseq
    %v645 = vshrl.u32 %v644, 7
    %v646 = vsub.s32 0, %v645
    %v647 = vrot.slane %v642, %v646
    %v649 = vadd.f32 %v638, %v647
    %v650 = vadd.f32 %v641, %v647
    %v651 = vmul.f32 %v649, %v87
    %v652 = vmul.f32 %v650, %v88
    %vm653 = vcmask 7168
    %v654 = vsel %vm653, %v651, -inf
    %v655 = vrot.slane %v654, 4
    %v656 = vmax.f32 %v654, %v655
    %v657 = vrot.slane %v656, 2
    %v658 = vmax.f32 %v656, %v657
    %v659 = vrot.slane %v658, 1
    %v660 = vmax.f32 %v658, %v659
    %v661 = vsel %vm653, %v652, -inf
    %v662 = vrot.slane %v661, 4
    %v663 = vmax.f32 %v661, %v662
    %v664 = vrot.slane %v663, 2
    %v665 = vmax.f32 %v663, %v664
    %v666 = vrot.slane %v665, 1
    %v667 = vmax.f32 %v665, %v666
    %v668 = vsub.f32 %v651, %v660
    %v669 = vsub.f32 %v652, %v667
    %v670 = vmul.f32 %v668, 1.442695
    %v671 = vpow.pop %v670
    %v672 = vmul.f32 %v669, 1.442695
    %v673 = vpow.pop %v672
    %v674 = vsel %vm653, %v671, 0.0
    %v675 = vrot.slane %v674, 4
    %v676 = vadd.f32 %v674, %v675
    %v677 = vrot.slane %v676, 2
    %v678 = vadd.f32 %v676, %v677
    %v679 = vrot.slane %v678, 1
    %v680 = vadd.f32 %v678, %v679
    %v681 = vsel %vm653, %v673, 0.0
    %v682 = vrot.slane %v681, 4
    %v683 = vadd.f32 %v681, %v682
    %v684 = vrot.slane %v683, 2
    %v685 = vadd.f32 %v683, %v684
    %v686 = vrot.slane %v685, 1
    %v687 = vadd.f32 %v685, %v686
    %v688 = vrcp.pop %v680
    %v689 = vrcp.pop %v687
    %v690 = vmul.f32 %v671, %v688
    %v691 = vmul.f32 %v673, %v689
    %v692 = vmul.f32 %v690, %v87
    %v693 = vmul.f32 %v691, %v88
    %v694 = vsel %vm653, %v692, 0.0
    %v695 = vrot.slane %v694, 4
    %v696 = vadd.f32 %v694, %v695
    %v697 = vrot.slane %v696, 2
    %v698 = vadd.f32 %v696, %v697
    %v699 = vrot.slane %v698, 1
    %v700 = vadd.f32 %v698, %v699
    %v701 = vsel %vm653, %v693, 0.0
    %v702 = vrot.slane %v701, 4
    %v703 = vadd.f32 %v701, %v702
    %v704 = vrot.slane %v703, 2
    %v705 = vadd.f32 %v703, %v704
    %v706 = vrot.slane %v705, 1
    %v707 = vadd.f32 %v705, %v706
    %v708 = vadd.f32 %v700, 1e-13
    %v709 = vadd.f32 %v707, 1e-13
    %v710 = vrcp.pop %v708
    %v711 = vrcp.pop %v709
    %v712 = vmul.f32 %v692, %v710
    %v713 = vmul.f32 %v693, %v711
    %v714 = vunpack.c.l.bf16 %v83
    %v715 = vunpack.c.l.bf16 %v84
    %717 = vset.pattern.permute.xlu0 0
    %718 = vperm.xlu0 %717, %v712
    %v719 = vpop.permute.xlu0 %718
    %722 = vset.pattern.permute.xlu0 0
    %723 = vperm.xlu0 %722, %v713
    %v724 = vpop.permute.xlu0 %723
    %v726 = vmul.f32 %v719, %v714
    %v727 = vmul.f32 %v724, %v715
    %v728 = vsel %vm117, %v726, 0.0
    %v729 = vrot.slane %v728, 4
    %v730 = vadd.f32 %v728, %v729
    %v731 = vrot.slane %v730, 2
    %v732 = vadd.f32 %v730, %v731
    %v733 = vrot.slane %v732, 1
    %v734 = vadd.f32 %v732, %v733
    %v735 = vsel %vm117, %v727, 0.0
    %v736 = vrot.slane %v735, 4
    %v737 = vadd.f32 %v735, %v736
    %v738 = vrot.slane %v737, 2
    %v739 = vadd.f32 %v737, %v738
    %v740 = vrot.slane %v739, 1
    %v741 = vadd.f32 %v739, %v740
    %vm744 = vcmask 1041409
    %v745 = vsel %vm744, %v741, %v734
    %vm747 = vcmask 254976
    %748 = vst.msk [vmem:[#allocation9] sm:$0x3] %vm747, %v745
    // Predicated region
    $region58: #{tpu_custom_call.1} parent=1 // pred_check
      _
    $region59: #{tpu_custom_call.1} parent=1 // pred_check_branch
      %750 = sbr.rel (0) target = $region61
    $region60: #{tpu_custom_call.1} parent=1 // pred_region
      %s752 = ssub.s32 32, 32
      %753 = vsyncadd [#allocation5], %s752
      %s755 = sshll.u32 [#allocation9], 4
      %s756 = int_to_ptr.vmem [resolvable:$true] %s755
      %758 = dma.vmem_to_hbm [thread:$0]  %s756, 32, %s11, [#allocation5]
    $region61: #{tpu_custom_call.1} parent=1 // pred_fallthru
      _
    // Predicated region
    $region62: #{tpu_custom_call.1} parent=1 // pred_check
      _
    $region63: #{tpu_custom_call.1} parent=1 // pred_check_branch
      %760 = sbr.rel (0) target = $region65
    $region64: #{tpu_custom_call.1} parent=1 // pred_region
      %761 = dma.done [#allocation5], 32
    $region65: #{tpu_custom_call.1} parent=1 // pred_fallthru
      _
    %762 = vsyncpa [#allocation4], 1
    %763 = vsyncpa [#allocation7], 1
    %764 = vsyncpa [#allocation5], 1

</llo_original>
